<compile_context>
chip_gen: v7x
topology: tpu7x:2x2x1
jax: 0.10.0
libtpu: 0.0.40
codegen_flags: <defaults>
</compile_context>

<pallas_src>
import math

import jax
import jax.numpy as jnp
from jax.experimental import pallas as pl
from jax.experimental.pallas import tpu as pltpu


def _value_kernel(x_ref, w_ref, b_ref, o_ref):
    # x_ref: (TB, D) VMEM (native dtype), w_ref: (1, D) VMEM (resident),
    # b_ref: (1,) f32 SMEM, o_ref: (TB, 1) f32 VMEM.
    x = x_ref[...].astype(jnp.float32)            # VPU convert; HBM stream stays narrow
    w = w_ref[...].astype(jnp.float32)            # (1, D): sublane-broadcast over rows
    # NOTE: the (1, D) sublane broadcast is re-emitted each grid step, but it is
    # D/128 vregs of XLU/VPU filler fully hidden under the x DMA stream.
    acc = jnp.sum(x * w, axis=-1, keepdims=True)  # VPU mul + XLU row reduce, f32 acc
    o_ref[...] = acc + b_ref[0]                   # scalar bias from SMEM


def _tpu_generation():
    """Best-effort TPU generation from the device kind ('TPU v5 lite' -> 5)."""
    try:
        kind = jax.devices()[0].device_kind.lower().replace(" ", "")
    except Exception:
        return 0
    for g in (7, 6, 5, 4, 3):
        if f"v{g}" in kind or f"tpu{g}" in kind:
            return g
    return 0


_SUBLANE_PACK = {4: 8, 2: 16, 1: 32}  # rows per packed sublane group, by itemsize


def _choose_tile_rows(B, D, itemsize, gen):
    """Batch-tile rows sized by a byte budget (not a fixed row cap).

    Per-row VMEM cost of the double-buffered pipeline:
      * x:   2 buffers * D * itemsize bytes/row
      * out: (tb, 1) f32 blocks are lane-padded to 128 lanes -> 2 * 512 B/row
    v7x (64 MiB VMEM per TensorCore) gets a smaller budget than v5e/v6e (128 MiB).
    """
    budget = (16 if gen >= 7 else 32) * 1024 * 1024
    per_row = 2 * D * itemsize + 2 * 128 * 4
    rows = max(budget // per_row, 1)
    pack = _SUBLANE_PACK.get(itemsize, 32)
    rows = max(pack, (rows // pack) * pack)
    if B <= rows:
        return B                                  # single full-extent block (always legal)
    return rows


def value_forward(x, weight, bias):
    """Pallas forward of Value: x @ weight.T + bias  ->  (..., 1) float32.

    x:      (..., D) floating dtype (streamed in native dtype, f32 accumulate)
    weight: (1, D)   torch nn.Linear layout, kept lane-dense (no transpose)
    bias:   (1,)
    """
    weight = weight.reshape(1, -1)
    bias = jnp.asarray(bias, dtype=jnp.float32).reshape(-1)

    lead = x.shape[:-1]
    D = x.shape[-1]
    x2 = x.reshape(-1, D)
    B = x2.shape[0]

    gen = _tpu_generation()
    itemsize = x2.dtype.itemsize
    tb = _choose_tile_rows(B, D, itemsize, gen)
    num_tiles = pl.cdiv(B, tb)

    # Right-size the scoped VMEM request: actual footprint + margin, capped well
    # below physical capacity (v7x TC has only 64 MiB total).
    x_bytes = 2 * tb * D * itemsize                     # double-buffered x tiles
    out_bytes = 2 * tb * 128 * 4                        # lane-padded (tb, 1) f32 blocks
    w_bytes = 2 * 8 * D * weight.dtype.itemsize         # sublane-padded resident weight
    vmem_limit = x_bytes + out_bytes + w_bytes + 2 * 1024 * 1024
    vmem_limit = int(min(vmem_limit, (32 if gen >= 7 else 100) * 1024 * 1024))

    # v7x has 2 TensorCores per chip with separate HBM streams: shard batch
    # tiles across them.  Plain "parallel" elsewhere (single TC, harmless).
    if gen >= 7 and num_tiles > 1:
        dim_sems = (pltpu.CORE_PARALLEL,)
    else:
        dim_sems = ("parallel",)

    cost = pl.CostEstimate(
        flops=2 * B * D,
        transcendentals=0,
        bytes_accessed=B * D * itemsize + D * weight.dtype.itemsize + 4 + B * 4,
    )

    out = pl.pallas_call(
        _value_kernel,
        out_shape=jax.ShapeDtypeStruct((B, 1), jnp.float32),
        grid_spec=pl.GridSpec(
            grid=(num_tiles,),
            in_specs=[
                pl.BlockSpec((tb, D), lambda i: (i, 0)),            # streamed x tiles
                pl.BlockSpec((1, D), lambda i: (0, 0)),             # resident weight
                pl.BlockSpec(memory_space=pltpu.MemorySpace.SMEM),  # scalar bias
            ],
            out_specs=pl.BlockSpec((tb, 1), lambda i: (i, 0)),
        ),
        compiler_params=pltpu.CompilerParams(
            dimension_semantics=dim_sems,
            vmem_limit_bytes=vmem_limit,
        ),
        cost_estimate=cost,
    )(x2, weight, bias)

    return out.reshape(*lead, 1)


def init_value_params(key, n_inputs):
    """Deterministic init matching the PyTorch module:
    - weight (1, n_inputs): xavier_normal_  (std = sqrt(2 / (fan_in + fan_out)))
    - bias   (1,):          default nn.Linear init U(-1/sqrt(fan_in), 1/sqrt(fan_in))
    """
    kw, kb = jax.random.split(key)
    fan_in, fan_out = n_inputs, 1
    std = math.sqrt(2.0 / (fan_in + fan_out))
    weight = std * jax.random.normal(kw, (1, n_inputs), dtype=jnp.float32)
    bound = 1.0 / math.sqrt(fan_in)
    bias = jax.random.uniform(
        kb, (1,), minval=-bound, maxval=bound, dtype=jnp.float32
    )
    return weight, bias


if __name__ == "__main__":
    key = jax.random.PRNGKey(0)
    k_x, k_p = jax.random.split(key)

    # NOTE: at this tiny demo shape a custom kernel is pure overhead vs. letting
    # XLA fuse the matvec — kept small per instructions; the kernel itself tiles
    # and streams correctly for large (B, D).
    batch, n_inputs = 8, 32
    x = jax.random.normal(k_x, (batch, n_inputs), dtype=jnp.float32)
    weight, bias = init_value_params(k_p, n_inputs)

    out = jax.block_until_ready(value_forward(x, weight, bias))
    ref = x @ weight.T + bias
    assert out.shape == (batch, 1)
    assert jnp.allclose(out, ref, atol=1e-5, rtol=1e-5)

    # Native-dtype streaming path (no wrapper upcast): bf16 activations.
    x_bf16 = x.astype(jnp.bfloat16)
    out_bf16 = jax.block_until_ready(value_forward(x_bf16, weight, bias))
    ref_bf16 = x_bf16.astype(jnp.float32) @ weight.T + bias
    assert out_bf16.shape == (batch, 1)
    assert jnp.allclose(out_bf16, ref_bf16, atol=1e-5, rtol=1e-5)

    print("KERNEL_OK")
</pallas_src>

<mosaic_0001>
module attributes {stable_mosaic.version = 11 : i64} {
  func.func @_value_kernel(%arg0: i32, %arg1: memref<8x32xf32, #tpu.memory_space<vmem>>, %arg2: memref<1x32xf32, #tpu.memory_space<vmem>>, %arg3: memref<1xf32, #tpu.memory_space<smem>>, %arg4: memref<8x1xf32, #tpu.memory_space<vmem>>) attributes {dimension_semantics = [#tpu.dimension_semantics<parallel>], iteration_bounds = array<i64: 1>, scalar_prefetch = 0 : i64, scratch_operands = 0 : i64, tpu.core_type = #tpu.core_type<tc>, window_params = [{transform_indices = @transform_0, window_bounds = array<i64: 8, 32>}, {pipeline_mode = #tpu.pipeline_mode<synchronous>, transform_indices = @transform_1, window_bounds = array<i64: 1, 32>}, {transform_indices = @transform_2, window_bounds = array<i64: 1>}, {transform_indices = @transform_3, window_bounds = array<i64: 8, 1>}]} {
    %c0 = arith.constant 0 : index
    %c0_0 = arith.constant 0 : index
    %0 = vector.load %arg1[%c0, %c0_0] : memref<8x32xf32, #tpu.memory_space<vmem>>, vector<8x32xf32>
    %c0_1 = arith.constant 0 : index
    %c0_2 = arith.constant 0 : index
    %1 = vector.load %arg2[%c0_1, %c0_2] : memref<1x32xf32, #tpu.memory_space<vmem>>, vector<1x32xf32>
    %2 = vector.broadcast %1 : vector<1x32xf32> to vector<8x32xf32>
    %3 = arith.mulf %0, %2 : vector<8x32xf32>
    %cst = arith.constant dense<0.000000e+00> : vector<8xf32>
    %4 = vector.multi_reduction <add>, %3, %cst [1] : vector<8x32xf32> to vector<8xf32>
    %5 = vector.shape_cast %4 : vector<8xf32> to vector<8x1xf32>
    %c0_3 = arith.constant 0 : index
    %6 = memref.load %arg3[%c0_3] : memref<1xf32, #tpu.memory_space<smem>>
    %7 = vector.broadcast %6 : f32 to vector<8x1xf32>
    %8 = arith.addf %5, %7 : vector<8x1xf32>
    %c0_4 = arith.constant 0 : index
    %c0_5 = arith.constant 0 : index
    %9 = vector.load %arg4[%c0_4, %c0_5] : memref<8x1xf32, #tpu.memory_space<vmem>>, vector<8x1xf32>
    tpu.vector_store %arg4[%c0_4, %c0_5], %8 {strides = array<i32>} : memref<8x1xf32, #tpu.memory_space<vmem>>, vector<8x1xf32>,
    return
  }
  func.func @transform_0(%arg0: i32) -> (i32, i32) {
    %c0_i32 = arith.constant 0 : i32
    %c0_i32_0 = arith.constant 0 : i32
    return %arg0, %c0_i32 : i32, i32
  }
  func.func @transform_1(%arg0: i32) -> (i32, i32) {
    %c0_i32 = arith.constant 0 : i32
    %c0_i32_0 = arith.constant 0 : i32
    %c0_i32_1 = arith.constant 0 : i32
    return %c0_i32, %c0_i32_0 : i32, i32
  }
  func.func @transform_2(%arg0: i32) -> i32 {
    %c0_i32 = arith.constant 0 : i32
    %c0_i32_0 = arith.constant 0 : i32
    return %c0_i32 : i32
  }
  func.func @transform_3(%arg0: i32) -> (i32, i32) {
    %c0_i32 = arith.constant 0 : i32
    %c0_i32_0 = arith.constant 0 : i32
    return %arg0, %c0_i32 : i32, i32
  }
}

</mosaic_0001>

<llo_original>
// kernel: tpu_custom_call.1
$region0: #{tpu_custom_call.1}
  #allocation0 [shape = 'u32[]', space=smem, size = 0x4, offset = 0x4, fixed_abs, tag = 'smem constant byte address 0x4 - core index']
  #allocation1 [shape = 'u32[144,128]{1,0:T(1,128)}', space=vmem, size = 0x12000, scoped, tag = 'internal scratch']
  #allocation2 [shape = 'f32[1]{0:T(128)S(6)}', space=smem, size = 0x200, scoped, tag = 'scoped memory for tpu_custom_call.1']
  %s0 = inlined_call_operand.hbm [shape: f32[8,32], index: 0, kind: input, shape index: {}]
  %s1 = inlined_call_operand.vmem [shape: f32[1,32], index: 1, kind: input, shape index: {}]
  %s2 = inlined_call_operand.<no memory space> [shape: f32[1], index: 2, kind: input, shape index: {}]
  %s3 = inlined_call_operand.vmem [shape: f32[8,1], index: 3, kind: output, shape index: {}]
  %s4 = sld [smem:[#allocation0]]
  $region26: #{tpu_custom_call.1} parent=0
    _
  %s6 = ssub.s32 1, %s4
  %s7 = scalar_select 0, %s6, %s4
  %8 = sst [smem:[#allocation2]] %s2
  $region1: #{tpu_custom_call.1} parent=0
    #allocation3 [shape = 'u8[4096]{0}', space=vmem, size = 0x1000, scoped, tag = 'input window, operand 0, single buffered']
    #allocation4 [shape = 's32[1]{0}', space=sflag, size = 0x4, scoped, tag = 'scoped memory for tpu_custom_call.1']
    %9 = vsyncpa [#allocation4], 0
    // Predicated region
    $region2: #{tpu_custom_call.1} parent=1 // pred_check
      _
    $region3: #{tpu_custom_call.1} parent=1 // pred_check_branch
      %11 = sbr.rel (0) target = $region5
    $region4: #{tpu_custom_call.1} parent=1 // pred_region
      %s13 = ssub.s32 128, 128
      %14 = vsyncadd [#allocation4], %s13
      %s16 = sshll.u32 [#allocation3], 4
      %s17 = int_to_ptr.vmem [resolvable:$true] %s16
      %19 = dma.hbm_to_vmem [thread:$0]  %s0, 128, %s17, [#allocation4]
    $region5: #{tpu_custom_call.1} parent=1 // pred_fallthru
      _
    // Predicated region
    $region6: #{tpu_custom_call.1} parent=1 // pred_check
      _
    $region7: #{tpu_custom_call.1} parent=1 // pred_check_branch
      %21 = sbr.rel (0) target = $region9
    $region8: #{tpu_custom_call.1} parent=1 // pred_region
      _
    $region9: #{tpu_custom_call.1} parent=1 // pred_fallthru
      _
    // Predicated region
    $region10: #{tpu_custom_call.1} parent=1 // pred_check
      _
    $region11: #{tpu_custom_call.1} parent=1 // pred_check_branch
      %23 = sbr.rel (0) target = $region13
    $region12: #{tpu_custom_call.1} parent=1 // pred_region
      _
    $region13: #{tpu_custom_call.1} parent=1 // pred_fallthru
      _
    // Predicated region
    $region14: #{tpu_custom_call.1} parent=1 // pred_check
      _
    $region15: #{tpu_custom_call.1} parent=1 // pred_check_branch
      %25 = sbr.rel (0) target = $region17
    $region16: #{tpu_custom_call.1} parent=1 // pred_region
      %26 = dma.done [#allocation4], 128
    $region17: #{tpu_custom_call.1} parent=1 // pred_fallthru
      _
    %v27 = vld [vmem:[#allocation3] sm:$0xff]
    %v28 = vld [vmem:[%s1] sm:$0x1]
    %v30 = vlaneseq
    %v31 = vshrl.u32 %v30, 7
    %v32 = vsub.s32 0, %v31
    %v33 = vrot.slane %v28, %v32
    %v35 = vmul.f32 %v27, %v33
    %vm36 = vcmask 261120
    %v37 = vsel %vm36, %v35, 0.0
    %38 = vadd.xlane.f32.xlu0 %v37
    %v39 = vpop.xlane.xlu0 %38
    %s40 = sld [smem:[#allocation2]]
    %v41 = vstv %s40
    %v42 = vadd.f32 %v39, %v41
    %vm43 = vcmask 7168
    %44 = vst.msk [vmem:[%s3] sm:$0xff] %vm43, %v42
    // Predicated region
    $region18: #{tpu_custom_call.1} parent=1 // pred_check
      _
    $region19: #{tpu_custom_call.1} parent=1 // pred_check_branch
      %46 = sbr.rel (0) target = $region21
    $region20: #{tpu_custom_call.1} parent=1 // pred_region
      _
    $region21: #{tpu_custom_call.1} parent=1 // pred_fallthru
      _
    // Predicated region
    $region22: #{tpu_custom_call.1} parent=1 // pred_check
      _
    $region23: #{tpu_custom_call.1} parent=1 // pred_check_branch
      %48 = sbr.rel (0) target = $region25
    $region24: #{tpu_custom_call.1} parent=1 // pred_region
      _
    $region25: #{tpu_custom_call.1} parent=1 // pred_fallthru
      _
    %49 = vsyncpa [#allocation4], 1

</llo_original>
